<compile_context>
chip_gen: v7x
topology: tpu7x:2x2x1
jax: 0.10.0
libtpu: 0.0.40
codegen_flags: <defaults>
</compile_context>

<pallas_src>
import functools

import jax
import jax.numpy as jnp
from jax import lax
from jax.experimental import pallas as pl
from jax.experimental.pallas import tpu as pltpu

BETA = 4   # exponent on (1 - input) / (1 - target)   (hard-coded as multiplies)
ALPHA = 2  # exponent on input for background term    (hard-coded as multiplies)

_LANE = 128
_SUBLANE = 8
_MAX_BLOCK_ROWS = 2048  # (2048, 128) f32 tile = 1 MiB; 2 inputs x 2 buffers = 4 MiB VMEM


def _focal_loss_kernel(x_ref, t_ref, loss_ref, cnt_ref, *,
                       block_rows, total_rows, need_mask):
    x = x_ref[...].astype(jnp.float32)
    t = t_ref[...].astype(jnp.float32)

    pos = t == 1.0

    # Strength-reduced integer powers (pure VPU multiplies).
    q = 1.0 - x            # (1 - input)
    q2 = q * q
    q4 = q2 * q2           # (1 - input)^4
    s = 1.0 - t            # (1 - target)
    s2 = s * s
    s4 = s2 * s2           # (1 - target)^4

    # One fused log per element: log(x) for positives, log(1 - x) otherwise.
    coef = jnp.where(pos, q4, s4 * (x * x))
    lg = jnp.log(jnp.where(pos, x, q))
    elem = coef * lg                       # per-element focal-loss contribution
    posf = pos.astype(jnp.float32)

    if need_mask:
        # Ragged last grid block: rows past the true row count hold
        # unspecified data; zero their contributions (jnp.where kills any
        # NaN/Inf produced in the masked lanes).
        row_ids = lax.broadcasted_iota(jnp.int32, (block_rows, _LANE), 0)
        g_row = pl.program_id(0) * block_rows + row_ids
        valid = g_row < total_rows
        elem = jnp.where(valid, elem, 0.0)
        posf = jnp.where(valid, posf, 0.0)

    # Per-block lane-dense partials; scalar collapse happens outside the kernel.
    loss_ref[0] = jnp.sum(elem, axis=0, keepdims=True)   # (1, 128)
    cnt_ref[0] = jnp.sum(posf, axis=0, keepdims=True)    # (1, 128)


def focal_loss(x, target):
    """Scalar focal loss over arbitrarily-shaped (matching) x / target."""
    xf = x.reshape(-1)
    tf = target.reshape(-1)
    n = xf.shape[0]

    tile = _SUBLANE * _LANE
    pad = (-n) % tile
    if pad:
        # Fallback only for ragged totals (rare for real heatmaps). Zero
        # padding is inert: pos=False, coef = (1-0)^4 * 0^2 = 0, log(1-0) = 0.
        xf = jnp.pad(xf, (0, pad))
        tf = jnp.pad(tf, (0, pad))

    rows = (n + pad) // _LANE              # multiple of 8
    x2 = xf.reshape(rows, _LANE)
    t2 = tf.reshape(rows, _LANE)

    block_rows = rows if rows <= _MAX_BLOCK_ROWS else _MAX_BLOCK_ROWS
    num_blocks = pl.cdiv(rows, block_rows)
    need_mask = (rows % block_rows) != 0

    kernel = functools.partial(
        _focal_loss_kernel,
        block_rows=block_rows,
        total_rows=rows,
        need_mask=need_mask,
    )

    out_loss, out_cnt = pl.pallas_call(
        kernel,
        out_shape=(
            jax.ShapeDtypeStruct((num_blocks, 1, _LANE), jnp.float32),
            jax.ShapeDtypeStruct((num_blocks, 1, _LANE), jnp.float32),
        ),
        grid=(num_blocks,),
        in_specs=[
            pl.BlockSpec((block_rows, _LANE), lambda i: (i, 0)),
            pl.BlockSpec((block_rows, _LANE), lambda i: (i, 0)),
        ],
        out_specs=(
            pl.BlockSpec((1, 1, _LANE), lambda i: (i, 0, 0)),
            pl.BlockSpec((1, 1, _LANE), lambda i: (i, 0, 0)),
        ),
        compiler_params=pltpu.CompilerParams(
            dimension_semantics=("parallel",),
        ),
    )(x2, t2)

    loss_sum = jnp.sum(out_loss)
    n_pos = jnp.sum(out_cnt)
    return -loss_sum / (n_pos + 1e-5)


def _reference_focal_loss(x, target):
    x = x.astype(jnp.float32)
    t = target.astype(jnp.float32)
    pos = t == 1.0
    loss_f = jnp.where(pos, (1.0 - x) ** BETA * jnp.log(x), 0.0)
    loss_b = jnp.where(
        pos, 0.0, (1.0 - t) ** BETA * (x ** ALPHA) * jnp.log(1.0 - x)
    )
    n_pos = jnp.sum(pos.astype(jnp.float32))
    return -(jnp.sum(loss_b) + jnp.sum(loss_f)) / (n_pos + 1e-5)


if __name__ == "__main__":
    key = jax.random.PRNGKey(0)
    k_x, k_u, k_g = jax.random.split(key, 3)

    B, C, H, W = 2, 4, 16, 16  # NCHW heatmaps
    # Predicted probabilities in (0, 1).
    x = jax.nn.sigmoid(jax.random.normal(k_x, (B, C, H, W), dtype=jnp.float32))
    # Gaussian-style target heatmap in [0, 1) with some entries exactly 1.
    u = jax.random.uniform(k_u, (B, C, H, W), dtype=jnp.float32)
    g = jax.random.uniform(k_g, (B, C, H, W), dtype=jnp.float32)
    target = jnp.where(u > 0.95, 1.0, g * 0.9)

    loss = focal_loss(x, target)
    jax.block_until_ready(loss)

    ref = _reference_focal_loss(x, target)
    assert jnp.allclose(loss, ref, rtol=1e-5, atol=1e-5), (loss, ref)

    print("KERNEL_OK")
</pallas_src>

<mosaic_0001>
module attributes {stable_mosaic.version = 11 : i64} {
  func.func @_focal_loss_kernel(%arg0: i32, %arg1: memref<16x128xf32, #tpu.memory_space<vmem>>, %arg2: memref<16x128xf32, #tpu.memory_space<vmem>>, %arg3: memref<1x1x128xf32, #tpu.memory_space<vmem>>, %arg4: memref<1x1x128xf32, #tpu.memory_space<vmem>>) attributes {dimension_semantics = [#tpu.dimension_semantics<parallel>], iteration_bounds = array<i64: 1>, scalar_prefetch = 0 : i64, scratch_operands = 0 : i64, tpu.core_type = #tpu.core_type<tc>, window_params = [{transform_indices = @transform_0, window_bounds = array<i64: 16, 128>}, {transform_indices = @transform_1, window_bounds = array<i64: 16, 128>}, {transform_indices = @transform_2, window_bounds = array<i64: 1, 1, 128>}, {transform_indices = @transform_3, window_bounds = array<i64: 1, 1, 128>}]} {
    %c0 = arith.constant 0 : index
    %c0_0 = arith.constant 0 : index
    %0 = vector.load %arg1[%c0, %c0_0] : memref<16x128xf32, #tpu.memory_space<vmem>>, vector<16x128xf32>
    %c0_1 = arith.constant 0 : index
    %c0_2 = arith.constant 0 : index
    %1 = vector.load %arg2[%c0_1, %c0_2] : memref<16x128xf32, #tpu.memory_space<vmem>>, vector<16x128xf32>
    %cst = arith.constant 1.000000e+00 : f32
    %2 = vector.broadcast %cst : f32 to vector<16x128xf32>
    %3 = arith.cmpf oeq, %1, %2 : vector<16x128xf32>
    %cst_3 = arith.constant 1.000000e+00 : f32
    %4 = vector.broadcast %cst_3 : f32 to vector<16x128xf32>
    %5 = arith.subf %4, %0 : vector<16x128xf32>
    %6 = arith.mulf %5, %5 : vector<16x128xf32>
    %7 = arith.mulf %6, %6 : vector<16x128xf32>
    %cst_4 = arith.constant 1.000000e+00 : f32
    %8 = vector.broadcast %cst_4 : f32 to vector<16x128xf32>
    %9 = arith.subf %8, %1 : vector<16x128xf32>
    %10 = arith.mulf %9, %9 : vector<16x128xf32>
    %11 = arith.mulf %10, %10 : vector<16x128xf32>
    %12 = arith.mulf %0, %0 : vector<16x128xf32>
    %13 = arith.mulf %11, %12 : vector<16x128xf32>
    %14 = arith.select %3, %7, %13 : vector<16x128xi1>, vector<16x128xf32>
    %15 = arith.select %3, %0, %5 : vector<16x128xi1>, vector<16x128xf32>
    %16 = math.log %15 : vector<16x128xf32>
    %17 = arith.mulf %14, %16 : vector<16x128xf32>
    %18 = arith.extui %3 : vector<16x128xi1> to vector<16x128xi32>
    %19 = arith.sitofp %18 : vector<16x128xi32> to vector<16x128xf32>
    %cst_5 = arith.constant dense<0.000000e+00> : vector<128xf32>
    %20 = vector.multi_reduction <add>, %17, %cst_5 [0] : vector<16x128xf32> to vector<128xf32>
    %21 = vector.shape_cast %20 : vector<128xf32> to vector<1x128xf32>
    %c0_6 = arith.constant 0 : index
    %c0_7 = arith.constant 0 : index
    %c0_8 = arith.constant 0 : index
    %22 = vector.load %arg3[%c0_6, %c0_7, %c0_8] : memref<1x1x128xf32, #tpu.memory_space<vmem>>, vector<1x1x128xf32>
    %23 = vector.shape_cast %22 : vector<1x1x128xf32> to vector<1x128xf32>
    %24 = vector.shape_cast %21 : vector<1x128xf32> to vector<1x1x128xf32>
    tpu.vector_store %arg3[%c0_6, %c0_7, %c0_8], %24 {strides = array<i32>} : memref<1x1x128xf32, #tpu.memory_space<vmem>>, vector<1x1x128xf32>,
    %cst_9 = arith.constant dense<0.000000e+00> : vector<128xf32>
    %25 = vector.multi_reduction <add>, %19, %cst_9 [0] : vector<16x128xf32> to vector<128xf32>
    %26 = vector.shape_cast %25 : vector<128xf32> to vector<1x128xf32>
    %c0_10 = arith.constant 0 : index
    %c0_11 = arith.constant 0 : index
    %c0_12 = arith.constant 0 : index
    %27 = vector.load %arg4[%c0_10, %c0_11, %c0_12] : memref<1x1x128xf32, #tpu.memory_space<vmem>>, vector<1x1x128xf32>
    %28 = vector.shape_cast %27 : vector<1x1x128xf32> to vector<1x128xf32>
    %29 = vector.shape_cast %26 : vector<1x128xf32> to vector<1x1x128xf32>
    tpu.vector_store %arg4[%c0_10, %c0_11, %c0_12], %29 {strides = array<i32>} : memref<1x1x128xf32, #tpu.memory_space<vmem>>, vector<1x1x128xf32>,
    return
  }
  func.func @transform_0(%arg0: i32) -> (i32, i32) {
    %c0_i32 = arith.constant 0 : i32
    %c0_i32_0 = arith.constant 0 : i32
    return %arg0, %c0_i32 : i32, i32
  }
  func.func @transform_1(%arg0: i32) -> (i32, i32) {
    %c0_i32 = arith.constant 0 : i32
    %c0_i32_0 = arith.constant 0 : i32
    return %arg0, %c0_i32 : i32, i32
  }
  func.func @transform_2(%arg0: i32) -> (i32, i32, i32) {
    %c0_i32 = arith.constant 0 : i32
    %c0_i32_0 = arith.constant 0 : i32
    %c0_i32_1 = arith.constant 0 : i32
    return %arg0, %c0_i32, %c0_i32_0 : i32, i32, i32
  }
  func.func @transform_3(%arg0: i32) -> (i32, i32, i32) {
    %c0_i32 = arith.constant 0 : i32
    %c0_i32_0 = arith.constant 0 : i32
    %c0_i32_1 = arith.constant 0 : i32
    return %arg0, %c0_i32, %c0_i32_0 : i32, i32, i32
  }
}

</mosaic_0001>

<llo_original>
// kernel: tpu_custom_call.1
$region0: #{tpu_custom_call.1}
  #allocation0 [shape = 'u32[]', space=smem, size = 0x4, offset = 0x4, fixed_abs, tag = 'smem constant byte address 0x4 - core index']
  #allocation1 [shape = 'u32[144,128]{1,0:T(1,128)}', space=vmem, size = 0x12000, scoped, tag = 'internal scratch']
  %s0 = inlined_call_operand.hbm [shape: f32[16,128], index: 0, kind: input, shape index: {}]
  %s1 = inlined_call_operand.hbm [shape: f32[16,128], index: 1, kind: input, shape index: {}]
  %s2 = inlined_call_operand.hbm [shape: f32[1,1,128], index: 2, kind: output, shape index: {0}]
  %s3 = inlined_call_operand.hbm [shape: f32[1,1,128], index: 3, kind: output, shape index: {1}]
  %4 = xla_tuple %s2, %s3
  %s5 = sld [smem:[#allocation0]]
  $region34: #{tpu_custom_call.1} parent=0
    _
  %s7 = ssub.s32 1, %s5
  %s8 = scalar_select 0, %s7, %s5
  $region1: #{tpu_custom_call.1} parent=0
    #allocation2 [shape = 'u8[8192]{0}', space=vmem, size = 0x2000, scoped, tag = 'input window, operand 0, single buffered']
    #allocation3 [shape = 's32[1]{0}', space=sflag, size = 0x4, scoped, tag = 'scoped memory for tpu_custom_call.1']
    #allocation4 [shape = 's32[1]{0}', space=sflag, size = 0x4, scoped, tag = 'scoped memory for tpu_custom_call.1']
    #allocation5 [shape = 'u8[8192]{0}', space=vmem, size = 0x2000, scoped, tag = 'input window, operand 1, single buffered']
    #allocation6 [shape = 's32[1]{0}', space=sflag, size = 0x4, scoped, tag = 'scoped memory for tpu_custom_call.1']
    #allocation7 [shape = 'u8[512]{0}', space=vmem, size = 0x400, scoped, tag = 'output window, operand 0, single buffered']
    #allocation8 [shape = 'u8[512]{0}', space=vmem, size = 0x400, scoped, tag = 'output window, operand 1, single buffered']
    #allocation9 [shape = 's32[1]{0}', space=sflag, size = 0x4, scoped, tag = 'scoped memory for tpu_custom_call.1']
    %9 = vsyncpa [#allocation3], 0
    %10 = vsyncpa [#allocation6], 0
    %11 = vsyncpa [#allocation4], 0
    %12 = vsyncpa [#allocation9], 0
    // Predicated region
    $region2: #{tpu_custom_call.1} parent=1 // pred_check
      _
    $region3: #{tpu_custom_call.1} parent=1 // pred_check_branch
      %14 = sbr.rel (0) target = $region5
    $region4: #{tpu_custom_call.1} parent=1 // pred_region
      %s16 = ssub.s32 256, 256
      %17 = vsyncadd [#allocation3], %s16
      %s18 = sshll.u32 [#allocation2], 4
      %s19 = int_to_ptr.vmem [resolvable:$true] %s18
      %24 = dma.hbm_to_vmem [thread:$0]  %s0, 256, %s19, [#allocation3], 128, 128, 8
    $region5: #{tpu_custom_call.1} parent=1 // pred_fallthru
      _
    // Predicated region
    $region6: #{tpu_custom_call.1} parent=1 // pred_check
      _
    $region7: #{tpu_custom_call.1} parent=1 // pred_check_branch
      %26 = sbr.rel (0) target = $region9
    $region8: #{tpu_custom_call.1} parent=1 // pred_region
      %s28 = ssub.s32 256, 256
      %29 = vsyncadd [#allocation6], %s28
      %s30 = sshll.u32 [#allocation5], 4
      %s31 = int_to_ptr.vmem [resolvable:$true] %s30
      %36 = dma.hbm_to_vmem [thread:$0]  %s1, 256, %s31, [#allocation6], 128, 128, 8
    $region9: #{tpu_custom_call.1} parent=1 // pred_fallthru
      _
    // Predicated region
    $region10: #{tpu_custom_call.1} parent=1 // pred_check
      _
    $region11: #{tpu_custom_call.1} parent=1 // pred_check_branch
      %38 = sbr.rel (0) target = $region13
    $region12: #{tpu_custom_call.1} parent=1 // pred_region
      %39 = dma.done [#allocation3], 256
    $region13: #{tpu_custom_call.1} parent=1 // pred_fallthru
      _
    // Predicated region
    $region14: #{tpu_custom_call.1} parent=1 // pred_check
      _
    $region15: #{tpu_custom_call.1} parent=1 // pred_check_branch
      %41 = sbr.rel (0) target = $region17
    $region16: #{tpu_custom_call.1} parent=1 // pred_region
      %42 = dma.done [#allocation6], 256
    $region17: #{tpu_custom_call.1} parent=1 // pred_fallthru
      _
    %v43 = vld [vmem:[#allocation2] sm:$0xff]
    %v44 = vld [vmem:[#allocation2 + $0x8] sm:$0xff]
    %v45 = vld [vmem:[#allocation5] sm:$0xff]
    %v46 = vld [vmem:[#allocation5 + $0x8] sm:$0xff]
    %vm47 = vcmp.eq.f32.partialorder %v45, 1.0
    %vm48 = vcmp.eq.f32.partialorder %v46, 1.0
    %v49 = vsub.f32 1.0, %v43
    %v50 = vsub.f32 1.0, %v44
    %v51 = vmul.f32 %v49, %v49
    %v52 = vmul.f32 %v50, %v50
    %v53 = vmul.f32 %v51, %v51
    %v54 = vmul.f32 %v52, %v52
    %v55 = vsub.f32 1.0, %v45
    %v56 = vsub.f32 1.0, %v46
    %v57 = vmul.f32 %v55, %v55
    %v58 = vmul.f32 %v56, %v56
    %v59 = vmul.f32 %v57, %v57
    %v60 = vmul.f32 %v58, %v58
    %v61 = vmul.f32 %v43, %v43
    %v62 = vmul.f32 %v44, %v44
    %v63 = vmul.f32 %v59, %v61
    %v64 = vmul.f32 %v60, %v62
    %v65 = vsel %vm47, %v53, %v63
    %v66 = vsel %vm48, %v54, %v64
    %v67 = vsel %vm47, %v43, %v49
    %v68 = vsel %vm48, %v44, %v50
    %v69 = vlog2.pop %v67
    %v70 = vmul.f32 %v69, 0.6931472
    %v71 = vlog2.pop %v68
    %v72 = vmul.f32 %v71, 0.6931472
    %v73 = vmul.f32 %v65, %v70
    %v74 = vmul.f32 %v66, %v72
    %v75 = vsel %vm47, 1, 0
    %v76 = vsel %vm48, 1, 0
    %v77 = vcvt.s32.f32 %v75
    %v78 = vcvt.s32.f32 %v76
    %v79 = vadd.f32 %v73, %v74
    %v80 = vrot.slane %v79, 4
    %v81 = vadd.f32 %v79, %v80
    %v82 = vrot.slane %v81, 2
    %v83 = vadd.f32 %v81, %v82
    %v84 = vrot.slane %v83, 1
    %v85 = vadd.f32 %v83, %v84
    %86 = vst [vmem:[#allocation7] sm:$0x1] %v85
    %v87 = vadd.f32 %v77, %v78
    %v88 = vrot.slane %v87, 4
    %v89 = vadd.f32 %v87, %v88
    %v90 = vrot.slane %v89, 2
    %v91 = vadd.f32 %v89, %v90
    %v92 = vrot.slane %v91, 1
    %v93 = vadd.f32 %v91, %v92
    %94 = vst [vmem:[#allocation8] sm:$0x1] %v93
    // Predicated region
    $region18: #{tpu_custom_call.1} parent=1 // pred_check
      _
    $region19: #{tpu_custom_call.1} parent=1 // pred_check_branch
      %96 = sbr.rel (0) target = $region21
    $region20: #{tpu_custom_call.1} parent=1 // pred_region
      %s98 = ssub.s32 16, 16
      %99 = vsyncadd [#allocation4], %s98
      %s101 = sshll.u32 [#allocation7], 4
      %s102 = int_to_ptr.vmem [resolvable:$true] %s101
      %104 = dma.vmem_to_hbm [thread:$0]  %s102, 16, %s2, [#allocation4]
    $region21: #{tpu_custom_call.1} parent=1 // pred_fallthru
      _
    // Predicated region
    $region22: #{tpu_custom_call.1} parent=1 // pred_check
      _
    $region23: #{tpu_custom_call.1} parent=1 // pred_check_branch
      %106 = sbr.rel (0) target = $region25
    $region24: #{tpu_custom_call.1} parent=1 // pred_region
      %s108 = ssub.s32 16, 16
      %109 = vsyncadd [#allocation9], %s108
      %s111 = sshll.u32 [#allocation8], 4
      %s112 = int_to_ptr.vmem [resolvable:$true] %s111
      %114 = dma.vmem_to_hbm [thread:$0]  %s112, 16, %s3, [#allocation9]
    $region25: #{tpu_custom_call.1} parent=1 // pred_fallthru
      _
    // Predicated region
    $region26: #{tpu_custom_call.1} parent=1 // pred_check
      _
    $region27: #{tpu_custom_call.1} parent=1 // pred_check_branch
      %116 = sbr.rel (0) target = $region29
    $region28: #{tpu_custom_call.1} parent=1 // pred_region
      %117 = dma.done [#allocation4], 16
    $region29: #{tpu_custom_call.1} parent=1 // pred_fallthru
      _
    // Predicated region
    $region30: #{tpu_custom_call.1} parent=1 // pred_check
      _
    $region31: #{tpu_custom_call.1} parent=1 // pred_check_branch
      %119 = sbr.rel (0) target = $region33
    $region32: #{tpu_custom_call.1} parent=1 // pred_region
      %120 = dma.done [#allocation9], 16
    $region33: #{tpu_custom_call.1} parent=1 // pred_fallthru
      _
    %121 = vsyncpa [#allocation3], 1
    %122 = vsyncpa [#allocation6], 1
    %123 = vsyncpa [#allocation4], 1
    %124 = vsyncpa [#allocation9], 1

</llo_original>
